<compile_context>
chip_gen: v7x
topology: tpu7x:2x2x1
jax: 0.10.0
libtpu: 0.0.40
codegen_flags: <defaults>
</compile_context>

<pallas_src>
import functools

import jax
import jax.numpy as jnp
from jax import lax
from jax.experimental import pallas as pl
from jax.experimental.pallas import tpu as pltpu

_MIB = 1024 * 1024


def _round_up(x, m):
    return ((x + m - 1) // m) * m


def _tpu_config():
    """Generation-aware (n_split, tile_budget_bytes, vmem_limit_cap_bytes)."""
    kind = ""
    try:
        kind = (jax.devices()[0].device_kind or "").lower()
    except Exception:
        pass
    vmem_cap = None
    try:
        vmem_cap = int(pltpu.get_tpu_info().vmem_capacity_bytes)
    except Exception:
        vmem_cap = None
    is_v7 = "v7" in kind
    if vmem_cap is None:
        vmem_cap = (64 if is_v7 else 128) * _MIB
    # v7x has 2 TensorCores -> split the batch reduction across them.
    # v5e/v6e are single-TC: a split is pure overhead (extra accumulators,
    # init/writeback, wrapper-side partial sum), so keep n_split=1 there.
    n_split = 2 if is_v7 else 1
    # Leave >= 16 MiB of VMEM unclaimed for Mosaic internal scratch.
    limit_cap = max(32 * _MIB, vmem_cap - 16 * _MIB)
    tile_budget = int(limit_cap * 0.75)
    return n_split, tile_budget, limit_cap


# ----------------------------- Pallas kernel ------------------------------ #

def _oja_kernel(x_ref, q_ref, qtq_ref, ex_ref, ep_ref, g_ref):
    """One batch tile of the fused Oja forward (Gram-identity error).

    x_ref  : (tm, Fp)  streamed batch tile (f32 or bf16)
    q_ref  : (Fp, Kp)  resident lane-padded components
    qtq_ref: (Kp, Kp)  resident f32 Q^T Q
    ex_ref : (8, Fp)   accumulator for sum(x*x)              (row-folded, f32)
    ep_ref : (8, Kp)   accumulator for sum((p@QtQ - 2p) * p) (row-folded, f32)
    g_ref  : (Fp, Kp)  accumulator for G = x^T (x Q)         (f32)
    """
    i = pl.program_id(1)          # inner (batch-reduction) axis

    @pl.when(i == 0)
    def _init():
        ex_ref[...] = jnp.zeros_like(ex_ref)
        ep_ref[...] = jnp.zeros_like(ep_ref)
        g_ref[...] = jnp.zeros_like(g_ref)

    x = x_ref[...]                                   # (tm, Fp)
    q = q_ref[...]                                   # (Fp, Kp)
    tm, Fp = x_ref.shape
    Kp = q_ref.shape[1]

    # projection = x @ Q                              (MXU, f32 accumulation)
    proj = jnp.dot(x, q, preferred_element_type=jnp.float32)          # (tm, Kp)

    # Gram identity:  ||x - proj Q^T||^2
    #   = sum(x^2) - 2*sum(proj^2) + sum((proj @ Q^T Q) * proj)
    # All error math stays f32 (cancellation-sensitive); folds over the row
    # axis use sublane groups of 8 (pure VPU adds, no per-step XLU reduce).
    xf = x.astype(jnp.float32)
    ex_ref[...] += jnp.sum((xf * xf).reshape(tm // 8, 8, Fp), axis=0)  # (8, Fp)

    pqt = jnp.dot(proj, qtq_ref[...],
                  preferred_element_type=jnp.float32)                 # (tm, Kp)
    e_p = (pqt - 2.0 * proj) * proj
    ep_ref[...] += jnp.sum(e_p.reshape(tm // 8, 8, Kp), axis=0)       # (8, Kp)

    # G += x^T @ proj, as a transpose-free contraction over the row axis.
    g_ref[...] += lax.dot_general(x, proj.astype(x.dtype),
                                  (((0,), (0,)), ((), ())),
                                  preferred_element_type=jnp.float32)  # (Fp, Kp)


# ------------------------------- Wrapper ----------------------------------- #

def _pick_tile(N, Fp, Kp, itemsize, n_split, tile_budget, max_tm=2048):
    """Largest multiple-of-8 batch tile whose working set fits the budget."""
    # Tile-size-independent residents (double-buffer conservative):
    fixed = (2 * Fp * Kp * itemsize        # Q (default double-buffered)
             + 2 * Kp * Kp * 4             # QtQ
             + 2 * Fp * Kp * 4             # G accumulator
             + 2 * 8 * (Fp + Kp) * 4)      # error slabs
    # Per-row bytes: double-buffered x stream + f32 x^2 temp + proj/pqt/e_p.
    per_row = Fp * (2 * itemsize + 4) + 12 * Kp
    avail = max(tile_budget - fixed, 0)
    # TODO(synk): no feature-axis tiling fallback; a huge Fp*Kp that exceeds
    # the VMEM budget would need F-tiling (not implemented).
    tm = max(8, min(max_tm, (avail // per_row // 8) * 8))
    rows_per_split = -(-N // n_split)      # ceil
    tm = max(8, min(tm, _round_up(rows_per_split, 8)))
    inner_tiles = -(-rows_per_split // tm)
    working_set = fixed + per_row * tm
    return tm, inner_tiles, working_set


@functools.partial(jax.jit, static_argnames=("compute_dtype",))
def oja_fused(x, Q, *, compute_dtype=jnp.float32):
    """Returns (sum_squared_error, G = x.T @ (x @ Q)) in float32.

    compute_dtype=jnp.bfloat16 halves the HBM bytes streamed for x/Q (the
    kernel is memory-bound) while keeping f32 accumulation everywhere.
    """
    N, F = x.shape
    F2, K = Q.shape
    assert F2 == F

    n_split, tile_budget, limit_cap = _tpu_config()
    Fp = _round_up(F, 128)                   # lane-dense feature axis
    Kp = _round_up(K, 128)                   # lane-dense component axis
    itemsize = jnp.dtype(compute_dtype).itemsize
    tm, inner_tiles, working_set = _pick_tile(N, Fp, Kp, itemsize,
                                              n_split, tile_budget)
    N_pad = n_split * inner_tiles * tm

    # Zero row / column padding is exact: padded rows contribute 0 to err/G,
    # padded feature/component columns of Q and x are no-ops.
    xc = x.astype(compute_dtype)
    if (N_pad, Fp) != (N, F):
        xc = jnp.pad(xc, ((0, N_pad - N), (0, Fp - F)))
    Qf = Q.astype(jnp.float32)
    if (Fp, Kp) != (F, K):
        Qf = jnp.pad(Qf, ((0, Fp - F), (0, Kp - K)))
    QtQ = jnp.dot(Qf.T, Qf)                  # (Kp, Kp), tiny, stays f32
    Qc = Qf.astype(compute_dtype)

    vmem_limit = int(max(32 * _MIB, min(limit_cap, working_set + 8 * _MIB)))

    ex_parts, ep_parts, g_parts = pl.pallas_call(
        _oja_kernel,
        out_shape=(
            jax.ShapeDtypeStruct((n_split, 8, Fp), jnp.float32),
            jax.ShapeDtypeStruct((n_split, 8, Kp), jnp.float32),
            jax.ShapeDtypeStruct((n_split, Fp, Kp), jnp.float32),
        ),
        grid_spec=pltpu.PrefetchScalarGridSpec(
            num_scalar_prefetch=0,
            grid=(n_split, inner_tiles),
            in_specs=[
                # x tile: flat row-block index = split * inner_tiles + step
                pl.BlockSpec((tm, Fp), lambda c, i: (c * inner_tiles + i, 0)),
                # Q and QtQ resident across the whole grid
                pl.BlockSpec((Fp, Kp), lambda c, i: (0, 0)),
                pl.BlockSpec((Kp, Kp), lambda c, i: (0, 0)),
            ],
            out_specs=[
                # per-split accumulators (leading split dim squeezed in-kernel)
                pl.BlockSpec((None, 8, Fp), lambda c, i: (c, 0, 0)),
                pl.BlockSpec((None, 8, Kp), lambda c, i: (c, 0, 0)),
                pl.BlockSpec((None, Fp, Kp), lambda c, i: (c, 0, 0)),
            ],
        ),
        compiler_params=pltpu.CompilerParams(
            # split axis parallel (2 TCs on v7x only), batch reduction arbitrary
            dimension_semantics=("parallel", "arbitrary"),
            vmem_limit_bytes=vmem_limit,
        ),
    )(xc, Qc, QtQ)

    err_sum = jnp.sum(ex_parts) + jnp.sum(ep_parts)
    G = jnp.sum(g_parts, axis=0)[:F, :K]
    return err_sum, G


# -------------------- Python-side module (state + glue) ------------------- #

class ReduceLROnPlateau:
    def __init__(self, mode="min", factor=0.1, patience=10, threshold=1e-4,
                 threshold_mode="rel", cooldown=0, min_lr=1e-8, eps=1e-8):
        self.mode = mode
        self.factor = factor
        self.patience = patience
        self.threshold = threshold
        self.threshold_mode = threshold_mode
        self.cooldown = cooldown
        self.min_lr = min_lr
        self.eps = eps
        self.best = None
        self.num_bad_epochs = 0
        self.cooldown_counter = 0
        if mode == "min":
            self.is_better = (lambda a, best: a < best - threshold) \
                if threshold_mode == "abs" else (lambda a, best: a < best * (1 - threshold))
        else:
            self.is_better = (lambda a, best: a > best + threshold) \
                if threshold_mode == "abs" else (lambda a, best: a > best * (1 + threshold))

    def step(self, metrics, current_lr):
        if self.best is None:
            self.best = metrics
            return current_lr
        if self.cooldown_counter > 0:
            self.cooldown_counter -= 1
            self.num_bad_epochs = 0
        if self.is_better(metrics, self.best):
            self.best = metrics
            self.num_bad_epochs = 0
        else:
            self.num_bad_epochs += 1
        if self.num_bad_epochs > self.patience:
            if self.cooldown_counter <= 0:
                new_lr = max(current_lr * self.factor, self.min_lr)
                if new_lr < current_lr - self.eps:
                    self.cooldown_counter = self.cooldown
                    self.num_bad_epochs = 0
                    return new_lr
        return current_lr


class OjaPCAROP:
    """JAX/Pallas port of the PyTorch OjaPCAROP module (use_oja_plus=False)."""

    def __init__(self, n_features, n_components, initial_eta=0.5, factor=0.1,
                 patience=10, threshold=1e-4, min_eta=1e-8, seed=0,
                 compute_dtype=jnp.bfloat16):
        self.n_features = n_features
        self.n_components = n_components
        self.eta = initial_eta
        # bf16 streaming by default (f32 accumulation); pass jnp.float32 for
        # the exact-torch numerics path.
        self.compute_dtype = compute_dtype
        key = jax.random.PRNGKey(seed)
        # Deterministic stand-in for torch.randn(n_features, n_components)
        self.Q = jax.random.normal(key, (n_features, n_components), jnp.float32)
        self.step_count = 0
        self.scheduler = ReduceLROnPlateau(mode="min", factor=factor,
                                           patience=patience, threshold=threshold,
                                           min_lr=min_eta)

    def forward(self, x):
        N, F = x.shape
        err_sum, G = oja_fused(x, self.Q, compute_dtype=self.compute_dtype)
        # QR re-orthonormalization of the Oja update (glue, not a Pallas kernel).
        # TODO(synk): QR factorization has no clean Pallas TPU equivalent; done in plain JAX.
        # Dispatch the Q update before syncing the scalar so the QR overlaps the
        # host round-trip needed by the (Python-float) scheduler metric.
        self.Q = jnp.linalg.qr(self.Q + self.eta * G)[0]
        current_error = float(err_sum) / (N * F)   # matches torch .mean().item()
        self.eta = self.scheduler.step(current_error, self.eta)
        self.step_count += 1
        return current_error

    def transform(self, x):
        return x @ self.Q

    def inverse_transform(self, z):
        return z @ self.Q.T

    def get_components(self):
        return self.Q.T


# --------------------------------- main ----------------------------------- #

if __name__ == "__main__":
    N, F, K = 64, 32, 8
    key = jax.random.PRNGKey(0)
    kx, _ = jax.random.split(key)
    x = jax.random.normal(kx, (N, F), jnp.float32)

    model = OjaPCAROP(n_features=F, n_components=K, initial_eta=0.5, seed=0)
    Q0 = model.Q

    # f32 (exact) path vs plain-jnp reference.
    err_sum, G = oja_fused(x, Q0, compute_dtype=jnp.float32)
    jax.block_until_ready((err_sum, G))
    proj_ref = x @ Q0
    recon_ref = proj_ref @ Q0.T
    err_ref = jnp.sum((x - recon_ref) ** 2)
    G_ref = x.T @ proj_ref
    assert jnp.allclose(err_sum, err_ref, rtol=1e-3, atol=1e-2), "error mismatch"
    assert jnp.allclose(G, G_ref, rtol=1e-4, atol=1e-3), "gram mismatch"

    # Ragged batch (exercises zero-row padding; no divisibility requirement).
    x_odd = x[:50]
    err_o, G_o = oja_fused(x_odd, Q0, compute_dtype=jnp.float32)
    p_o = x_odd @ Q0
    assert jnp.allclose(err_o, jnp.sum((x_odd - p_o @ Q0.T) ** 2),
                        rtol=1e-3, atol=1e-2), "ragged error mismatch"
    assert jnp.allclose(G_o, x_odd.T @ p_o, rtol=1e-4, atol=1e-3), "ragged gram mismatch"

    # bf16 streaming (default module path, halves HBM bytes); loose tolerance.
    err_b, G_b = oja_fused(x, Q0, compute_dtype=jnp.bfloat16)
    assert jnp.allclose(err_b, err_ref, rtol=1e-1, atol=2.0), "bf16 error mismatch"
    assert jnp.allclose(G_b, G_ref, rtol=1e-1, atol=2.0), "bf16 gram mismatch"

    # Full forward (error + Q update + scheduler + step counter).
    err = model.forward(x)
    jax.block_until_ready(model.Q)
    assert isinstance(err, float)

    print("KERNEL_OK")
</pallas_src>

<mosaic_0001>
module attributes {stable_mosaic.version = 11 : i64} {
  func.func @_oja_kernel(%arg0: i32, %arg1: i32, %arg2: memref<64x128xf32, #tpu.memory_space<vmem>>, %arg3: memref<128x128xf32, #tpu.memory_space<vmem>>, %arg4: memref<128x128xf32, #tpu.memory_space<vmem>>, %arg5: memref<1x8x128xf32, #tpu.memory_space<vmem>>, %arg6: memref<1x8x128xf32, #tpu.memory_space<vmem>>, %arg7: memref<1x128x128xf32, #tpu.memory_space<vmem>>) attributes {dimension_semantics = [#tpu.dimension_semantics<parallel>, #tpu.dimension_semantics<arbitrary>], iteration_bounds = array<i64: 1, 1>, scalar_prefetch = 0 : i64, scratch_operands = 0 : i64, tpu.core_type = #tpu.core_type<tc>, window_params = [{transform_indices = @transform_0, window_bounds = array<i64: 64, 128>}, {pipeline_mode = #tpu.pipeline_mode<synchronous>, transform_indices = @transform_1, window_bounds = array<i64: 128, 128>}, {pipeline_mode = #tpu.pipeline_mode<synchronous>, transform_indices = @transform_2, window_bounds = array<i64: 128, 128>}, {transform_indices = @transform_3, window_bounds = array<i64: 1, 8, 128>}, {transform_indices = @transform_4, window_bounds = array<i64: 1, 8, 128>}, {transform_indices = @transform_5, window_bounds = array<i64: 1, 128, 128>}]} {
    %c0_i32 = arith.constant 0 : i32
    %0 = arith.cmpi eq, %arg1, %c0_i32 : i32
    %1 = arith.extui %0 : i1 to i32
    %c0_i32_0 = arith.constant 0 : i32
    %2 = arith.cmpi ne, %1, %c0_i32_0 : i32
    scf.if %2 {
      %cst_29 = arith.constant 0.000000e+00 : f32
      %36 = vector.broadcast %cst_29 : f32 to vector<8x128xf32>
      %c0_30 = arith.constant 0 : index
      %c0_31 = arith.constant 0 : index
      %c0_32 = arith.constant 0 : index
      %37 = vector.load %arg5[%c0_30, %c0_31, %c0_32] : memref<1x8x128xf32, #tpu.memory_space<vmem>>, vector<1x8x128xf32>
      %38 = vector.shape_cast %37 : vector<1x8x128xf32> to vector<8x128xf32>
      %39 = vector.shape_cast %36 : vector<8x128xf32> to vector<1x8x128xf32>
      tpu.vector_store %arg5[%c0_30, %c0_31, %c0_32], %39 {strides = array<i32>} : memref<1x8x128xf32, #tpu.memory_space<vmem>>, vector<1x8x128xf32>,
      %cst_33 = arith.constant 0.000000e+00 : f32
      %40 = vector.broadcast %cst_33 : f32 to vector<8x128xf32>
      %c0_34 = arith.constant 0 : index
      %c0_35 = arith.constant 0 : index
      %c0_36 = arith.constant 0 : index
      %41 = vector.load %arg6[%c0_34, %c0_35, %c0_36] : memref<1x8x128xf32, #tpu.memory_space<vmem>>, vector<1x8x128xf32>
      %42 = vector.shape_cast %41 : vector<1x8x128xf32> to vector<8x128xf32>
      %43 = vector.shape_cast %40 : vector<8x128xf32> to vector<1x8x128xf32>
      tpu.vector_store %arg6[%c0_34, %c0_35, %c0_36], %43 {strides = array<i32>} : memref<1x8x128xf32, #tpu.memory_space<vmem>>, vector<1x8x128xf32>,
      %cst_37 = arith.constant 0.000000e+00 : f32
      %44 = vector.broadcast %cst_37 : f32 to vector<128x128xf32>
      %c0_38 = arith.constant 0 : index
      %c0_39 = arith.constant 0 : index
      %c0_40 = arith.constant 0 : index
      %45 = vector.load %arg7[%c0_38, %c0_39, %c0_40] : memref<1x128x128xf32, #tpu.memory_space<vmem>>, vector<1x128x128xf32>
      %46 = vector.shape_cast %45 : vector<1x128x128xf32> to vector<128x128xf32>
      %47 = vector.shape_cast %44 : vector<128x128xf32> to vector<1x128x128xf32>
      tpu.vector_store %arg7[%c0_38, %c0_39, %c0_40], %47 {strides = array<i32>} : memref<1x128x128xf32, #tpu.memory_space<vmem>>, vector<1x128x128xf32>,
    } else {
    }
    %c0 = arith.constant 0 : index
    %c0_1 = arith.constant 0 : index
    %3 = vector.load %arg2[%c0, %c0_1] : memref<64x128xf32, #tpu.memory_space<vmem>>, vector<64x128xf32>
    %c0_2 = arith.constant 0 : index
    %c0_3 = arith.constant 0 : index
    %4 = vector.load %arg3[%c0_2, %c0_3] : memref<128x128xf32, #tpu.memory_space<vmem>>, vector<128x128xf32>
    %cst = arith.constant dense<0.000000e+00> : vector<64x128xf32>
    %5 = tpu.matmul %3, %4, %cst {dimension_numbers = #tpu.dot_dimension_numbers<[1], [0], [0], [1], [0, 0, 1, 1], [], []>} : vector<64x128xf32>, vector<128x128xf32>, vector<64x128xf32> -> vector<64x128xf32>
    %c0_4 = arith.constant 0 : index
    %c0_5 = arith.constant 0 : index
    %c0_6 = arith.constant 0 : index
    %6 = vector.load %arg5[%c0_4, %c0_5, %c0_6] : memref<1x8x128xf32, #tpu.memory_space<vmem>>, vector<1x8x128xf32>
    %7 = vector.shape_cast %6 : vector<1x8x128xf32> to vector<8x128xf32>
    %8 = arith.mulf %3, %3 : vector<64x128xf32>
    %9 = vector.shape_cast %8 : vector<64x128xf32> to vector<8x8x128xf32>
    %cst_7 = arith.constant dense<0.000000e+00> : vector<8x128xf32>
    %10 = vector.multi_reduction <add>, %9, %cst_7 [0] : vector<8x8x128xf32> to vector<8x128xf32>
    %11 = arith.addf %7, %10 : vector<8x128xf32>
    %c0_8 = arith.constant 0 : index
    %c0_9 = arith.constant 0 : index
    %c0_10 = arith.constant 0 : index
    %12 = vector.load %arg5[%c0_8, %c0_9, %c0_10] : memref<1x8x128xf32, #tpu.memory_space<vmem>>, vector<1x8x128xf32>
    %13 = vector.shape_cast %12 : vector<1x8x128xf32> to vector<8x128xf32>
    %14 = vector.shape_cast %11 : vector<8x128xf32> to vector<1x8x128xf32>
    tpu.vector_store %arg5[%c0_8, %c0_9, %c0_10], %14 {strides = array<i32>} : memref<1x8x128xf32, #tpu.memory_space<vmem>>, vector<1x8x128xf32>,
    %c0_11 = arith.constant 0 : index
    %c0_12 = arith.constant 0 : index
    %15 = vector.load %arg4[%c0_11, %c0_12] : memref<128x128xf32, #tpu.memory_space<vmem>>, vector<128x128xf32>
    %cst_13 = arith.constant dense<0.000000e+00> : vector<64x128xf32>
    %16 = tpu.matmul %5, %15, %cst_13 {dimension_numbers = #tpu.dot_dimension_numbers<[1], [0], [0], [1], [0, 0, 1, 1], [], []>} : vector<64x128xf32>, vector<128x128xf32>, vector<64x128xf32> -> vector<64x128xf32>
    %cst_14 = arith.constant 2.000000e+00 : f32
    %17 = vector.broadcast %cst_14 : f32 to vector<64x128xf32>
    %18 = arith.mulf %17, %5 : vector<64x128xf32>
    %19 = arith.subf %16, %18 : vector<64x128xf32>
    %20 = arith.mulf %19, %5 : vector<64x128xf32>
    %c0_15 = arith.constant 0 : index
    %c0_16 = arith.constant 0 : index
    %c0_17 = arith.constant 0 : index
    %21 = vector.load %arg6[%c0_15, %c0_16, %c0_17] : memref<1x8x128xf32, #tpu.memory_space<vmem>>, vector<1x8x128xf32>
    %22 = vector.shape_cast %21 : vector<1x8x128xf32> to vector<8x128xf32>
    %23 = vector.shape_cast %20 : vector<64x128xf32> to vector<8x8x128xf32>
    %cst_18 = arith.constant dense<0.000000e+00> : vector<8x128xf32>
    %24 = vector.multi_reduction <add>, %23, %cst_18 [0] : vector<8x8x128xf32> to vector<8x128xf32>
    %25 = arith.addf %22, %24 : vector<8x128xf32>
    %c0_19 = arith.constant 0 : index
    %c0_20 = arith.constant 0 : index
    %c0_21 = arith.constant 0 : index
    %26 = vector.load %arg6[%c0_19, %c0_20, %c0_21] : memref<1x8x128xf32, #tpu.memory_space<vmem>>, vector<1x8x128xf32>
    %27 = vector.shape_cast %26 : vector<1x8x128xf32> to vector<8x128xf32>
    %28 = vector.shape_cast %25 : vector<8x128xf32> to vector<1x8x128xf32>
    tpu.vector_store %arg6[%c0_19, %c0_20, %c0_21], %28 {strides = array<i32>} : memref<1x8x128xf32, #tpu.memory_space<vmem>>, vector<1x8x128xf32>,
    %c0_22 = arith.constant 0 : index
    %c0_23 = arith.constant 0 : index
    %c0_24 = arith.constant 0 : index
    %29 = vector.load %arg7[%c0_22, %c0_23, %c0_24] : memref<1x128x128xf32, #tpu.memory_space<vmem>>, vector<1x128x128xf32>
    %30 = vector.shape_cast %29 : vector<1x128x128xf32> to vector<128x128xf32>
    %cst_25 = arith.constant dense<0.000000e+00> : vector<128x128xf32>
    %31 = tpu.matmul %3, %5, %cst_25 {dimension_numbers = #tpu.dot_dimension_numbers<[0], [0], [1], [1], [0, 1, 1, 1], [], []>} : vector<64x128xf32>, vector<64x128xf32>, vector<128x128xf32> -> vector<128x128xf32>
    %32 = arith.addf %30, %31 : vector<128x128xf32>
    %c0_26 = arith.constant 0 : index
    %c0_27 = arith.constant 0 : index
    %c0_28 = arith.constant 0 : index
    %33 = vector.load %arg7[%c0_26, %c0_27, %c0_28] : memref<1x128x128xf32, #tpu.memory_space<vmem>>, vector<1x128x128xf32>
    %34 = vector.shape_cast %33 : vector<1x128x128xf32> to vector<128x128xf32>
    %35 = vector.shape_cast %32 : vector<128x128xf32> to vector<1x128x128xf32>
    tpu.vector_store %arg7[%c0_26, %c0_27, %c0_28], %35 {strides = array<i32>} : memref<1x128x128xf32, #tpu.memory_space<vmem>>, vector<1x128x128xf32>,
    return
  }
  func.func @transform_0(%arg0: i32, %arg1: i32) -> (i32, i32) {
    %c1_i32 = arith.constant 1 : i32
    %0 = arith.muli %arg0, %c1_i32 : i32
    %1 = arith.addi %0, %arg1 : i32
    %c0_i32 = arith.constant 0 : i32
    %c0_i32_0 = arith.constant 0 : i32
    return %1, %c0_i32 : i32, i32
  }
  func.func @transform_1(%arg0: i32, %arg1: i32) -> (i32, i32) {
    %c0_i32 = arith.constant 0 : i32
    %c0_i32_0 = arith.constant 0 : i32
    %c0_i32_1 = arith.constant 0 : i32
    return %c0_i32, %c0_i32_0 : i32, i32
  }
  func.func @transform_2(%arg0: i32, %arg1: i32) -> (i32, i32) {
    %c0_i32 = arith.constant 0 : i32
    %c0_i32_0 = arith.constant 0 : i32
    %c0_i32_1 = arith.constant 0 : i32
    return %c0_i32, %c0_i32_0 : i32, i32
  }
  func.func @transform_3(%arg0: i32, %arg1: i32) -> (i32, i32, i32) {
    %c0_i32 = arith.constant 0 : i32
    %c0_i32_0 = arith.constant 0 : i32
    %c0_i32_1 = arith.constant 0 : i32
    return %arg0, %c0_i32, %c0_i32_0 : i32, i32, i32
  }
  func.func @transform_4(%arg0: i32, %arg1: i32) -> (i32, i32, i32) {
    %c0_i32 = arith.constant 0 : i32
    %c0_i32_0 = arith.constant 0 : i32
    %c0_i32_1 = arith.constant 0 : i32
    return %arg0, %c0_i32, %c0_i32_0 : i32, i32, i32
  }
  func.func @transform_5(%arg0: i32, %arg1: i32) -> (i32, i32, i32) {
    %c0_i32 = arith.constant 0 : i32
    %c0_i32_0 = arith.constant 0 : i32
    %c0_i32_1 = arith.constant 0 : i32
    return %arg0, %c0_i32, %c0_i32_0 : i32, i32, i32
  }
}

</mosaic_0001>

<llo_original>
// kernel: oja_fused.1
$region0: #{oja_fused.1}
  #allocation0 [shape = 'u32[]', space=smem, size = 0x4, offset = 0x4, fixed_abs, tag = 'smem constant byte address 0x4 - core index']
  #allocation1 [shape = 'u32[144,128]{1,0:T(1,128)}', space=vmem, size = 0x12000, scoped, tag = 'internal scratch']
  %s0 = inlined_call_operand.vmem [shape: f32[64,128], index: 0, kind: input, shape index: {}]
  %s1 = inlined_call_operand.vmem [shape: f32[128,128], index: 1, kind: input, shape index: {}]
  %s2 = inlined_call_operand.vmem [shape: f32[128,128], index: 2, kind: input, shape index: {}]
  %s3 = inlined_call_operand.vmem [shape: f32[1,8,128], index: 3, kind: output, shape index: {0}]
  %s4 = inlined_call_operand.vmem [shape: f32[1,8,128], index: 4, kind: output, shape index: {1}]
  %s5 = inlined_call_operand.vmem [shape: f32[1,128,128], index: 5, kind: output, shape index: {2}]
  %6 = xla_tuple %s3, %s4, %s5
  %s7 = sld [smem:[#allocation0]]
  $region42: #{oja_fused.1} parent=0
    _
  %s9 = ssub.s32 1, %s7
  %s10 = scalar_select 0, %s9, %s7
  // Predicated region
  $region2: #{oja_fused.1} parent=0 // pred_check
    _
  $region3: #{oja_fused.1} parent=0 // pred_check_branch
    %12 = sbr.rel (0) target = $region5
  $region4: #{oja_fused.1} parent=0 // pred_region
    %s13 = sadd.s32 0, 0
    %s14 = smul.u32 8, %s13
    %p15 = scmp.lt.s32.totalorder %s14, 7
    %s16 = scalar_select %p15, %s14, 7
    %s17 = smul.addr %s16, 8
    %s18 = scalar_lea.vmem %s0, %s17
    %s19 = sadd.s32 0, 0
    %s20 = smul.u32 8, %s19
  $region5: #{oja_fused.1} parent=0 // pred_fallthru
    _
  // Predicated region
  $region6: #{oja_fused.1} parent=0 // pred_check
    _
  $region7: #{oja_fused.1} parent=0 // pred_check_branch
    %22 = sbr.rel (0) target = $region9
  $region8: #{oja_fused.1} parent=0 // pred_region
    _
  $region9: #{oja_fused.1} parent=0 // pred_fallthru
    _
  // Predicated region
  $region10: #{oja_fused.1} parent=0 // pred_check
    _
  $region11: #{oja_fused.1} parent=0 // pred_check_branch
    %24 = sbr.rel (0) target = $region13
  $region12: #{oja_fused.1} parent=0 // pred_region
    _
  $region13: #{oja_fused.1} parent=0 // pred_fallthru
    _
  %s25 = sadd.s32 0, 0
  %s26 = smul.u32 8, %s25
  %p27 = scmp.lt.s32.totalorder %s26, 7
  %s28 = scalar_select %p27, %s26, 7
  %s29 = smul.addr %s28, 8
  %s30 = scalar_lea.vmem %s0, %s29
  %s31 = sadd.s32 0, 0
  %s32 = smul.u32 8, %s31
  %p33 = scmp.lt.s32.totalorder %s32, 7
  %s34 = scalar_select %p33, %s32, 7
  %s35 = smul.addr %s34, 8
  %s36 = scalar_lea.vmem %s0, %s35
  %s37 = sadd.s32 0, 0
  %s38 = smul.u32 8, %s37
  %p39 = scmp.eq.s32.totalorder 0, 0
  // Predicated region
  $region14: #{oja_fused.1} parent=0 // pred_check
    %p40 = pneg %p39
  $region15: #{oja_fused.1} parent=0 // pred_check_branch
    %42 = sbr.rel (%p40) target = $region17
  $region16: #{oja_fused.1} parent=0 // pred_region
    %43 = vst [vmem:[%s3] sm:$0xff] 0.0
    %44 = vst [vmem:[%s4] sm:$0xff] 0.0
    %45 = vst [vmem:[%s5] sm:$0xff] 0.0
    %46 = vst [vmem:[%s5 + $0x8] sm:$0xff] 0.0
    %47 = vst [vmem:[%s5 + $0x10] sm:$0xff] 0.0
    %48 = vst [vmem:[%s5 + $0x18] sm:$0xff] 0.0
    %49 = vst [vmem:[%s5 + $0x20] sm:$0xff] 0.0
    %50 = vst [vmem:[%s5 + $0x28] sm:$0xff] 0.0
    %51 = vst [vmem:[%s5 + $0x30] sm:$0xff] 0.0
    %52 = vst [vmem:[%s5 + $0x38] sm:$0xff] 0.0
    %53 = vst [vmem:[%s5 + $0x40] sm:$0xff] 0.0
    %54 = vst [vmem:[%s5 + $0x48] sm:$0xff] 0.0
    %55 = vst [vmem:[%s5 + $0x50] sm:$0xff] 0.0
    %56 = vst [vmem:[%s5 + $0x58] sm:$0xff] 0.0
    %57 = vst [vmem:[%s5 + $0x60] sm:$0xff] 0.0
    %58 = vst [vmem:[%s5 + $0x68] sm:$0xff] 0.0
    %59 = vst [vmem:[%s5 + $0x70] sm:$0xff] 0.0
    %60 = vst [vmem:[%s5 + $0x78] sm:$0xff] 0.0
  $region17: #{oja_fused.1} parent=0 // pred_fallthru
    _
  %v61 = vld [vmem:[%s36] sm:$0xff]
  %v62 = vld [vmem:[%s36 + $0x8] sm:$0xff]
  %v63 = vld [vmem:[%s36 + $0x10] sm:$0xff]
  %v64 = vld [vmem:[%s36 + $0x18] sm:$0xff]
  %v65 = vld [vmem:[%s36 + $0x20] sm:$0xff]
  %v66 = vld [vmem:[%s36 + $0x28] sm:$0xff]
  %v67 = vld [vmem:[%s36 + $0x30] sm:$0xff]
  %v68 = vld [vmem:[%s36 + $0x38] sm:$0xff]
  %v69 = vld [vmem:[%s1] sm:$0xff]
  %v70 = vld [vmem:[%s1 + $0x8] sm:$0xff]
  %v71 = vld [vmem:[%s1 + $0x10] sm:$0xff]
  %v72 = vld [vmem:[%s1 + $0x18] sm:$0xff]
  %v73 = vld [vmem:[%s1 + $0x20] sm:$0xff]
  %v74 = vld [vmem:[%s1 + $0x28] sm:$0xff]
  %v75 = vld [vmem:[%s1 + $0x30] sm:$0xff]
  %v76 = vld [vmem:[%s1 + $0x38] sm:$0xff]
  %v77 = vld [vmem:[%s1 + $0x40] sm:$0xff]
  %v78 = vld [vmem:[%s1 + $0x48] sm:$0xff]
  %v79 = vld [vmem:[%s1 + $0x50] sm:$0xff]
  %v80 = vld [vmem:[%s1 + $0x58] sm:$0xff]
  %v81 = vld [vmem:[%s1 + $0x60] sm:$0xff]
  %v82 = vld [vmem:[%s1 + $0x68] sm:$0xff]
  %v83 = vld [vmem:[%s1 + $0x70] sm:$0xff]
  %v84 = vld [vmem:[%s1 + $0x78] sm:$0xff]
  %85 = vmatprep.subr.mxu0 0.0
  %86 = vmatpush1.msra.mxu0 %v69
  %87 = vmatprep.subr.mxu0 0.0
  %88 = vmatpush1.msra.mxu0 %v70
  %89 = vmatprep.subr.mxu0 0.0
  %90 = vmatpush1.msra.mxu0 %v71
  %91 = vmatprep.subr.mxu0 0.0
  %92 = vmatpush1.msra.mxu0 %v72
  %93 = vmatprep.subr.mxu0 0.0
  %94 = vmatpush1.msra.mxu0 %v73
  %95 = vmatprep.subr.mxu0 0.0
  %96 = vmatpush1.msra.mxu0 %v74
  %97 = vmatprep.subr.mxu0 0.0
  %98 = vmatpush1.msra.mxu0 %v75
  %99 = vmatprep.subr.mxu0 0.0
  %100 = vmatpush1.msra.mxu0 %v76
  %101 = vmatprep.subr.mxu0 0.0
  %102 = vmatpush1.msra.mxu0 %v77
  %103 = vmatprep.subr.mxu0 0.0
  %104 = vmatpush1.msra.mxu0 %v78
  %105 = vmatprep.subr.mxu0 0.0
  %106 = vmatpush1.msra.mxu0 %v79
  %107 = vmatprep.subr.mxu0 0.0
  %108 = vmatpush1.msra.mxu0 %v80
  %109 = vmatprep.subr.mxu0 0.0
  %110 = vmatpush1.msra.mxu0 %v81
  %111 = vmatprep.subr.mxu0 0.0
  %112 = vmatpush1.msra.mxu0 %v82
  %113 = vmatprep.subr.mxu0 0.0
  %114 = vmatpush1.msra.mxu0 %v83
  %115 = vmatprep.subr.mxu0 0.0
  %116 = vmatpush1.msra.mxu0 %v84
  %117 = vmatprep.subr.mxu0 0.0
  %118 = vmatpush1.msra.mxu0 0.0
  %119 = vmatprep.subr.mxu0 0.0
  %120 = vmatpush1.msra.mxu0 0.0
  %121 = vmatprep.subr.mxu0 0.0
  %122 = vmatpush1.msra.mxu0 0.0
  %123 = vmatprep.subr.mxu0 0.0
  %124 = vmatpush1.msra.mxu0 0.0
  %125 = vmatprep.subr.mxu0 0.0
  %126 = vmatpush1.msra.mxu0 0.0
  %127 = vmatprep.subr.mxu0 0.0
  %128 = vmatpush1.msra.mxu0 0.0
  %129 = vmatprep.subr.mxu0 0.0
  %130 = vmatpush1.msra.mxu0 0.0
  %131 = vmatprep.subr.mxu0 0.0
  %132 = vmatpush1.msra.mxu0 0.0
  %133 = vmatprep.subr.mxu0 0.0
  %134 = vmatpush1.msra.mxu0 0.0
  %135 = vmatprep.subr.mxu0 0.0
  %136 = vmatpush1.msra.mxu0 0.0
  %137 = vmatprep.subr.mxu0 0.0
  %138 = vmatpush1.msra.mxu0 0.0
  %139 = vmatprep.subr.mxu0 0.0
  %140 = vmatpush1.msra.mxu0 0.0
  %141 = vmatprep.subr.mxu0 0.0
  %142 = vmatpush1.msra.mxu0 0.0
  %143 = vmatprep.subr.mxu0 0.0
  %144 = vmatpush1.msra.mxu0 0.0
  %145 = vmatprep.subr.mxu0 0.0
  %146 = vmatpush1.msra.mxu0 0.0
  %147 = vmatprep.subr.mxu0 0.0
  %148 = vmatpush1.msra.mxu0 0.0
  %149 = vmatprep.mubr.f32.mxu0 0.0
  %150 = vmatmul.mubr.f32.gmra.mrb[0].mxu0 %v61
  %v151 = vpop.f32.mrb[0].mxu0
  %v152 = vadd.f32 0.0, %v151
  %v153 = vpop.f32.mrb[0].mxu0
  %154 = vmatprep.mubr.f32.mxu0 0.0
  %155 = vmatmul.mubr.f32.gmra.mrb[0].mxu0 %v62
  %v156 = vpop.f32.mrb[0].mxu0
  %v157 = vadd.f32 0.0, %v156
  %v158 = vpop.f32.mrb[0].mxu0
  %159 = vmatprep.mubr.f32.mxu0 0.0
  %160 = vmatmul.mubr.f32.gmra.mrb[0].mxu0 %v63
  %v161 = vpop.f32.mrb[0].mxu0
  %v162 = vadd.f32 0.0, %v161
  %v163 = vpop.f32.mrb[0].mxu0
  %164 = vmatprep.mubr.f32.mxu0 0.0
  %165 = vmatmul.mubr.f32.gmra.mrb[0].mxu0 %v64
  %v166 = vpop.f32.mrb[0].mxu0
  %v167 = vadd.f32 0.0, %v166
  %v168 = vpop.f32.mrb[0].mxu0
  %169 = vmatprep.mubr.f32.mxu0 0.0
  %170 = vmatmul.mubr.f32.gmra.mrb[0].mxu0 %v65
  %v171 = vpop.f32.mrb[0].mxu0
  %v172 = vadd.f32 0.0, %v171
  %v173 = vpop.f32.mrb[0].mxu0
  %174 = vmatprep.mubr.f32.mxu0 0.0
  %175 = vmatmul.mubr.f32.gmra.mrb[0].mxu0 %v66
  %v176 = vpop.f32.mrb[0].mxu0
  %v177 = vadd.f32 0.0, %v176
  %v178 = vpop.f32.mrb[0].mxu0
  %179 = vmatprep.mubr.f32.mxu0 0.0
  %180 = vmatmul.mubr.f32.gmra.mrb[0].mxu0 %v67
  %v181 = vpop.f32.mrb[0].mxu0
  %v182 = vadd.f32 0.0, %v181
  %v183 = vpop.f32.mrb[0].mxu0
  %184 = vmatprep.mubr.f32.mxu0 0.0
  %185 = vmatmul.mubr.f32.gmra.mrb[0].mxu0 %v68
  %v186 = vpop.f32.mrb[0].mxu0
  %v187 = vadd.f32 0.0, %v186
  %v188 = vpop.f32.mrb[0].mxu0
  %189 = vdwg.mxu0
  %v190 = vld [vmem:[%s3] sm:$0xff]
  %v191 = vmul.f32 %v61, %v61
  %v192 = vmul.f32 %v62, %v62
  %v193 = vmul.f32 %v63, %v63
  %v194 = vmul.f32 %v64, %v64
  %v195 = vmul.f32 %v65, %v65
  %v196 = vmul.f32 %v66, %v66
  %v197 = vmul.f32 %v67, %v67
  %v198 = vmul.f32 %v68, %v68
  %v199 = vadd.f32 %v191, %v192
  %v200 = vadd.f32 %v199, %v193
  %v201 = vadd.f32 %v200, %v194
  %v202 = vadd.f32 %v201, %v195
  %v203 = vadd.f32 %v202, %v196
  %v204 = vadd.f32 %v203, %v197
  %v205 = vadd.f32 %v204, %v198
  %v206 = vadd.f32 %v190, %v205
  %207 = vst [vmem:[%s3] sm:$0xff] %v206
  %v208 = vld [vmem:[%s2] sm:$0xff]
  %v209 = vld [vmem:[%s2 + $0x8] sm:$0xff]
  %v210 = vld [vmem:[%s2 + $0x10] sm:$0xff]
  %v211 = vld [vmem:[%s2 + $0x18] sm:$0xff]
  %v212 = vld [vmem:[%s2 + $0x20] sm:$0xff]
  %v213 = vld [vmem:[%s2 + $0x28] sm:$0xff]
  %v214 = vld [vmem:[%s2 + $0x30] sm:$0xff]
  %v215 = vld [vmem:[%s2 + $0x38] sm:$0xff]
  %v216 = vld [vmem:[%s2 + $0x40] sm:$0xff]
  %v217 = vld [vmem:[%s2 + $0x48] sm:$0xff]
  %v218 = vld [vmem:[%s2 + $0x50] sm:$0xff]
  %v219 = vld [vmem:[%s2 + $0x58] sm:$0xff]
  %v220 = vld [vmem:[%s2 + $0x60] sm:$0xff]
  %v221 = vld [vmem:[%s2 + $0x68] sm:$0xff]
  %v222 = vld [vmem:[%s2 + $0x70] sm:$0xff]
  %v223 = vld [vmem:[%s2 + $0x78] sm:$0xff]
  %224 = vmatprep.subr.mxu0 0.0
  %225 = vmatpush1.msra.mxu0 %v208
  %226 = vmatprep.subr.mxu0 0.0
  %227 = vmatpush1.msra.mxu0 %v209
  %228 = vmatprep.subr.mxu0 0.0
  %229 = vmatpush1.msra.mxu0 %v210
  %230 = vmatprep.subr.mxu0 0.0
  %231 = vmatpush1.msra.mxu0 %v211
  %232 = vmatprep.subr.mxu0 0.0
  %233 = vmatpush1.msra.mxu0 %v212
  %234 = vmatprep.subr.mxu0 0.0
  %235 = vmatpush1.msra.mxu0 %v213
  %236 = vmatprep.subr.mxu0 0.0
  %237 = vmatpush1.msra.mxu0 %v214
  %238 = vmatprep.subr.mxu0 0.0
  %239 = vmatpush1.msra.mxu0 %v215
  %240 = vmatprep.subr.mxu0 0.0
  %241 = vmatpush1.msra.mxu0 %v216
  %242 = vmatprep.subr.mxu0 0.0
  %243 = vmatpush1.msra.mxu0 %v217
  %244 = vmatprep.subr.mxu0 0.0
  %245 = vmatpush1.msra.mxu0 %v218
  %246 = vmatprep.subr.mxu0 0.0
  %247 = vmatpush1.msra.mxu0 %v219
  %248 = vmatprep.subr.mxu0 0.0
  %249 = vmatpush1.msra.mxu0 %v220
  %250 = vmatprep.subr.mxu0 0.0
  %251 = vmatpush1.msra.mxu0 %v221
  %252 = vmatprep.subr.mxu0 0.0
  %253 = vmatpush1.msra.mxu0 %v222
  %254 = vmatprep.subr.mxu0 0.0
  %255 = vmatpush1.msra.mxu0 %v223
  %256 = vmatprep.subr.mxu0 0.0
  %257 = vmatpush1.msra.mxu0 0.0
  %258 = vmatprep.subr.mxu0 0.0
  %259 = vmatpush1.msra.mxu0 0.0
  %260 = vmatprep.subr.mxu0 0.0
  %261 = vmatpush1.msra.mxu0 0.0
  %262 = vmatprep.subr.mxu0 0.0
  %263 = vmatpush1.msra.mxu0 0.0
  %264 = vmatprep.subr.mxu0 0.0
  %265 = vmatpush1.msra.mxu0 0.0
  %266 = vmatprep.subr.mxu0 0.0
  %267 = vmatpush1.msra.mxu0 0.0
  %268 = vmatprep.subr.mxu0 0.0
  %269 = vmatpush1.msra.mxu0 0.0
  %270 = vmatprep.subr.mxu0 0.0
  %271 = vmatpush1.msra.mxu0 0.0
  %272 = vmatprep.subr.mxu0 0.0
  %273 = vmatpush1.msra.mxu0 0.0
  %274 = vmatprep.subr.mxu0 0.0
  %275 = vmatpush1.msra.mxu0 0.0
  %276 = vmatprep.subr.mxu0 0.0
  %277 = vmatpush1.msra.mxu0 0.0
  %278 = vmatprep.subr.mxu0 0.0
  %279 = vmatpush1.msra.mxu0 0.0
  %280 = vmatprep.subr.mxu0 0.0
  %281 = vmatpush1.msra.mxu0 0.0
  %282 = vmatprep.subr.mxu0 0.0
  %283 = vmatpush1.msra.mxu0 0.0
  %284 = vmatprep.subr.mxu0 0.0
  %285 = vmatpush1.msra.mxu0 0.0
  %286 = vmatprep.subr.mxu0 0.0
  %287 = vmatpush1.msra.mxu0 0.0
  %288 = vmatprep.mubr.f32.mxu0 0.0
  %289 = vmatmul.mubr.f32.gmra.mrb[0].mxu0 %v152
  %v290 = vpop.f32.mrb[0].mxu0
  %v291 = vadd.f32 0.0, %v290
  %v292 = vpop.f32.mrb[0].mxu0
  %293 = vmatprep.mubr.f32.mxu0 0.0
  %294 = vmatmul.mubr.f32.gmra.mrb[0].mxu0 %v157
  %v295 = vpop.f32.mrb[0].mxu0
  %v296 = vadd.f32 0.0, %v295
  %v297 = vpop.f32.mrb[0].mxu0
  %298 = vmatprep.mubr.f32.mxu0 0.0
  %299 = vmatmul.mubr.f32.gmra.mrb[0].mxu0 %v162
  %v300 = vpop.f32.mrb[0].mxu0
  %v301 = vadd.f32 0.0, %v300
  %v302 = vpop.f32.mrb[0].mxu0
  %303 = vmatprep.mubr.f32.mxu0 0.0
  %304 = vmatmul.mubr.f32.gmra.mrb[0].mxu0 %v167
  %v305 = vpop.f32.mrb[0].mxu0
  %v306 = vadd.f32 0.0, %v305
  %v307 = vpop.f32.mrb[0].mxu0
  %308 = vmatprep.mubr.f32.mxu0 0.0
  %309 = vmatmul.mubr.f32.gmra.mrb[0].mxu0 %v172
  %v310 = vpop.f32.mrb[0].mxu0
  %v311 = vadd.f32 0.0, %v310
  %v312 = vpop.f32.mrb[0].mxu0
  %313 = vmatprep.mubr.f32.mxu0 0.0
  %314 = vmatmul.mubr.f32.gmra.mrb[0].mxu0 %v177
  %v315 = vpop.f32.mrb[0].mxu0
  %v316 = vadd.f32 0.0, %v315
  %v317 = vpop.f32.mrb[0].mxu0
  %318 = vmatprep.mubr.f32.mxu0 0.0
  %319 = vmatmul.mubr.f32.gmra.mrb[0].mxu0 %v182
  %v320 = vpop.f32.mrb[0].mxu0
  %v321 = vadd.f32 0.0, %v320
  %v322 = vpop.f32.mrb[0].mxu0
  %323 = vmatprep.mubr.f32.mxu0 0.0
  %324 = vmatmul.mubr.f32.gmra.mrb[0].mxu0 %v187
  %v325 = vpop.f32.mrb[0].mxu0
  %v326 = vadd.f32 0.0, %v325
  %v327 = vpop.f32.mrb[0].mxu0
  %328 = vdwg.mxu0
  %v329 = vmul.f32 %v152, 2.0
  %v330 = vmul.f32 %v157, 2.0
  %v331 = vmul.f32 %v162, 2.0
  %v332 = vmul.f32 %v167, 2.0
  %v333 = vmul.f32 %v172, 2.0
  %v334 = vmul.f32 %v177, 2.0
  %v335 = vmul.f32 %v182, 2.0
  %v336 = vmul.f32 %v187, 2.0
  %v337 = vsub.f32 %v291, %v329
  %v338 = vsub.f32 %v296, %v330
  %v339 = vsub.f32 %v301, %v331
  %v340 = vsub.f32 %v306, %v332
  %v341 = vsub.f32 %v311, %v333
  %v342 = vsub.f32 %v316, %v334
  %v343 = vsub.f32 %v321, %v335
  %v344 = vsub.f32 %v326, %v336
  %v345 = vmul.f32 %v337, %v152
  %v346 = vmul.f32 %v338, %v157
  %v347 = vmul.f32 %v339, %v162
  %v348 = vmul.f32 %v340, %v167
  %v349 = vmul.f32 %v341, %v172
  %v350 = vmul.f32 %v342, %v177
  %v351 = vmul.f32 %v343, %v182
  %v352 = vmul.f32 %v344, %v187
  %v353 = vld [vmem:[%s4] sm:$0xff]
  %v354 = vadd.f32 %v345, %v346
  %v355 = vadd.f32 %v354, %v347
  %v356 = vadd.f32 %v355, %v348
  %v357 = vadd.f32 %v356, %v349
  %v358 = vadd.f32 %v357, %v350
  %v359 = vadd.f32 %v358, %v351
  %v360 = vadd.f32 %v359, %v352
  %v361 = vadd.f32 %v353, %v360
  %362 = vst [vmem:[%s4] sm:$0xff] %v361
  %v363 = vld [vmem:[%s5] sm:$0xff]
  %v364 = vld [vmem:[%s5 + $0x8] sm:$0xff]
  %v365 = vld [vmem:[%s5 + $0x10] sm:$0xff]
  %v366 = vld [vmem:[%s5 + $0x18] sm:$0xff]
  %v367 = vld [vmem:[%s5 + $0x20] sm:$0xff]
  %v368 = vld [vmem:[%s5 + $0x28] sm:$0xff]
  %v369 = vld [vmem:[%s5 + $0x30] sm:$0xff]
  %v370 = vld [vmem:[%s5 + $0x38] sm:$0xff]
  %v371 = vld [vmem:[%s5 + $0x40] sm:$0xff]
  %v372 = vld [vmem:[%s5 + $0x48] sm:$0xff]
  %v373 = vld [vmem:[%s5 + $0x50] sm:$0xff]
  %v374 = vld [vmem:[%s5 + $0x58] sm:$0xff]
  %v375 = vld [vmem:[%s5 + $0x60] sm:$0xff]
  %v376 = vld [vmem:[%s5 + $0x68] sm:$0xff]
  %v377 = vld [vmem:[%s5 + $0x70] sm:$0xff]
  %v378 = vld [vmem:[%s5 + $0x78] sm:$0xff]
  %379 = vxpose.xlu0.b32.start [1/16] %v61, 128
  %380 = vxpose.xlu0.b32.cont [2/16] %v62, 128
  %381 = vxpose.xlu0.b32.cont [3/16] %v63, 128
  %382 = vxpose.xlu0.b32.cont [4/16] %v64, 128
  %383 = vxpose.xlu0.b32.cont [5/16] %v65, 128
  %384 = vxpose.xlu0.b32.cont [6/16] %v66, 128
  %385 = vxpose.xlu0.b32.cont [7/16] %v67, 128
  %386 = vxpose.xlu0.b32.cont [8/16] %v68, 128
  %387 = vxpose.xlu0.b32.cont [9/16] 0.0, 128
  %388 = vxpose.xlu0.b32.cont [10/16] 0.0, 128
  %389 = vxpose.xlu0.b32.cont [11/16] 0.0, 128
  %390 = vxpose.xlu0.b32.cont [12/16] 0.0, 128
  %391 = vxpose.xlu0.b32.cont [13/16] 0.0, 128
  %392 = vxpose.xlu0.b32.cont [14/16] 0.0, 128
  %393 = vxpose.xlu0.b32.cont [15/16] 0.0, 128
  %394 = vxpose.xlu0.b32.end [16/16] 0.0, 128
  %v395 = vpop.trf.xlu0
  %v396 = vpop.trf.xlu0
  %v397 = vpop.trf.xlu0
  %v398 = vpop.trf.xlu0
  %v399 = vpop.trf.xlu0
  %v400 = vpop.trf.xlu0
  %v401 = vpop.trf.xlu0
  %v402 = vpop.trf.xlu0
  %v403 = vpop.trf.xlu0
  %v404 = vpop.trf.xlu0
  %v405 = vpop.trf.xlu0
  %v406 = vpop.trf.xlu0
  %v407 = vpop.trf.xlu0
  %v408 = vpop.trf.xlu0
  %v409 = vpop.trf.xlu0
  %v410 = vpop.trf.xlu0
  %vm411 = vcmask 523264
  %v413 = vsel %vm411, %v395, 0
  %v416 = vsel %vm411, %v396, 0
  %v419 = vsel %vm411, %v397, 0
  %v422 = vsel %vm411, %v398, 0
  %v425 = vsel %vm411, %v399, 0
  %v428 = vsel %vm411, %v400, 0
  %v431 = vsel %vm411, %v401, 0
  %v434 = vsel %vm411, %v402, 0
  %v437 = vsel %vm411, %v403, 0
  %v440 = vsel %vm411, %v404, 0
  %v443 = vsel %vm411, %v405, 0
  %v446 = vsel %vm411, %v406, 0
  %v449 = vsel %vm411, %v407, 0
  %v452 = vsel %vm411, %v408, 0
  %v455 = vsel %vm411, %v409, 0
  %v458 = vsel %vm411, %v410, 0
  %460 = vmatprep.subr.mxu0 0.0
  %461 = vmatpush1.msra.mxu0 %v152
  %462 = vmatprep.subr.mxu0 0.0
  %463 = vmatpush1.msra.mxu0 %v157
  %464 = vmatprep.subr.mxu0 0.0
  %465 = vmatpush1.msra.mxu0 %v162
  %466 = vmatprep.subr.mxu0 0.0
  %467 = vmatpush1.msra.mxu0 %v167
  %468 = vmatprep.subr.mxu0 0.0
  %469 = vmatpush1.msra.mxu0 %v172
  %470 = vmatprep.subr.mxu0 0.0
  %471 = vmatpush1.msra.mxu0 %v177
  %472 = vmatprep.subr.mxu0 0.0
  %473 = vmatpush1.msra.mxu0 %v182
  %474 = vmatprep.subr.mxu0 0.0
  %475 = vmatpush1.msra.mxu0 %v187
  %476 = vmatprep.subr.mxu0 0.0
  %477 = vmatpush1.msra.mxu0 0.0
  %478 = vmatprep.subr.mxu0 0.0
  %479 = vmatpush1.msra.mxu0 0.0
  %480 = vmatprep.subr.mxu0 0.0
  %481 = vmatpush1.msra.mxu0 0.0
  %482 = vmatprep.subr.mxu0 0.0
  %483 = vmatpush1.msra.mxu0 0.0
  %484 = vmatprep.subr.mxu0 0.0
  %485 = vmatpush1.msra.mxu0 0.0
  %486 = vmatprep.subr.mxu0 0.0
  %487 = vmatpush1.msra.mxu0 0.0
  %488 = vmatprep.subr.mxu0 0.0
  %489 = vmatpush1.msra.mxu0 0.0
  %490 = vmatprep.subr.mxu0 0.0
  %491 = vmatpush1.msra.mxu0 0.0
  %492 = vmatprep.subr.mxu0 0.0
  %493 = vmatpush1.msra.mxu0 0.0
  %494 = vmatprep.subr.mxu0 0.0
  %495 = vmatpush1.msra.mxu0 0.0
  %496 = vmatprep.subr.mxu0 0.0
  %497 = vmatpush1.msra.mxu0 0.0
  %498 = vmatprep.subr.mxu0 0.0
  %499 = vmatpush1.msra.mxu0 0.0
  %500 = vmatprep.subr.mxu0 0.0
  %501 = vmatpush1.msra.mxu0 0.0
  %502 = vmatprep.subr.mxu0 0.0
  %503 = vmatpush1.msra.mxu0 0.0
  %504 = vmatprep.subr.mxu0 0.0
  %505 = vmatpush1.msra.mxu0 0.0
  %506 = vmatprep.subr.mxu0 0.0
  %507 = vmatpush1.msra.mxu0 0.0
  %508 = vmatprep.subr.mxu0 0.0
  %509 = vmatpush1.msra.mxu0 0.0
  %510 = vmatprep.subr.mxu0 0.0
  %511 = vmatpush1.msra.mxu0 0.0
  %512 = vmatprep.subr.mxu0 0.0
  %513 = vmatpush1.msra.mxu0 0.0
  %514 = vmatprep.subr.mxu0 0.0
  %515 = vmatpush1.msra.mxu0 0.0
  %516 = vmatprep.subr.mxu0 0.0
  %517 = vmatpush1.msra.mxu0 0.0
  %518 = vmatprep.subr.mxu0 0.0
  %519 = vmatpush1.msra.mxu0 0.0
  %520 = vmatprep.subr.mxu0 0.0
  %521 = vmatpush1.msra.mxu0 0.0
  %522 = vmatprep.subr.mxu0 0.0
  %523 = vmatpush1.msra.mxu0 0.0
  %524 = vmatprep.mubr.f32.mxu0 0.0
  %525 = vmatmul.mubr.f32.gmra.mrb[0].mxu0 %v413
  %v526 = vpop.f32.mrb[0].mxu0
  %v527 = vadd.f32 0.0, %v526
  %v528 = vpop.f32.mrb[0].mxu0
  %529 = vmatprep.mubr.f32.mxu0 0.0
  %530 = vmatmul.mubr.f32.gmra.mrb[0].mxu0 %v416
  %v531 = vpop.f32.mrb[0].mxu0
  %v532 = vadd.f32 0.0, %v531
  %v533 = vpop.f32.mrb[0].mxu0
  %534 = vmatprep.mubr.f32.mxu0 0.0
  %535 = vmatmul.mubr.f32.gmra.mrb[0].mxu0 %v419
  %v536 = vpop.f32.mrb[0].mxu0
  %v537 = vadd.f32 0.0, %v536
  %v538 = vpop.f32.mrb[0].mxu0
  %539 = vmatprep.mubr.f32.mxu0 0.0
  %540 = vmatmul.mubr.f32.gmra.mrb[0].mxu0 %v422
  %v541 = vpop.f32.mrb[0].mxu0
  %v542 = vadd.f32 0.0, %v541
  %v543 = vpop.f32.mrb[0].mxu0
  %544 = vmatprep.mubr.f32.mxu0 0.0
  %545 = vmatmul.mubr.f32.gmra.mrb[0].mxu0 %v425
  %v546 = vpop.f32.mrb[0].mxu0
  %v547 = vadd.f32 0.0, %v546
  %v548 = vpop.f32.mrb[0].mxu0
  %549 = vmatprep.mubr.f32.mxu0 0.0
  %550 = vmatmul.mubr.f32.gmra.mrb[0].mxu0 %v428
  %v551 = vpop.f32.mrb[0].mxu0
  %v552 = vadd.f32 0.0, %v551
  %v553 = vpop.f32.mrb[0].mxu0
  %554 = vmatprep.mubr.f32.mxu0 0.0
  %555 = vmatmul.mubr.f32.gmra.mrb[0].mxu0 %v431
  %v556 = vpop.f32.mrb[0].mxu0
  %v557 = vadd.f32 0.0, %v556
  %v558 = vpop.f32.mrb[0].mxu0
  %559 = vmatprep.mubr.f32.mxu0 0.0
  %560 = vmatmul.mubr.f32.gmra.mrb[0].mxu0 %v434
  %v561 = vpop.f32.mrb[0].mxu0
  %v562 = vadd.f32 0.0, %v561
  %v563 = vpop.f32.mrb[0].mxu0
  %564 = vmatprep.mubr.f32.mxu0 0.0
  %565 = vmatmul.mubr.f32.gmra.mrb[0].mxu0 %v437
  %v566 = vpop.f32.mrb[0].mxu0
  %v567 = vadd.f32 0.0, %v566
  %v568 = vpop.f32.mrb[0].mxu0
  %569 = vmatprep.mubr.f32.mxu0 0.0
  %570 = vmatmul.mubr.f32.gmra.mrb[0].mxu0 %v440
  %v571 = vpop.f32.mrb[0].mxu0
  %v572 = vadd.f32 0.0, %v571
  %v573 = vpop.f32.mrb[0].mxu0
  %574 = vmatprep.mubr.f32.mxu0 0.0
  %575 = vmatmul.mubr.f32.gmra.mrb[0].mxu0 %v443
  %v576 = vpop.f32.mrb[0].mxu0
  %v577 = vadd.f32 0.0, %v576
  %v578 = vpop.f32.mrb[0].mxu0
  %579 = vmatprep.mubr.f32.mxu0 0.0
  %580 = vmatmul.mubr.f32.gmra.mrb[0].mxu0 %v446
  %v581 = vpop.f32.mrb[0].mxu0
  %v582 = vadd.f32 0.0, %v581
  %v583 = vpop.f32.mrb[0].mxu0
  %584 = vmatprep.mubr.f32.mxu0 0.0
  %585 = vmatmul.mubr.f32.gmra.mrb[0].mxu0 %v449
  %v586 = vpop.f32.mrb[0].mxu0
  %v587 = vadd.f32 0.0, %v586
  %v588 = vpop.f32.mrb[0].mxu0
  %589 = vmatprep.mubr.f32.mxu0 0.0
  %590 = vmatmul.mubr.f32.gmra.mrb[0].mxu0 %v452
  %v591 = vpop.f32.mrb[0].mxu0
  %v592 = vadd.f32 0.0, %v591
  %v593 = vpop.f32.mrb[0].mxu0
  %594 = vmatprep.mubr.f32.mxu0 0.0
  %595 = vmatmul.mubr.f32.gmra.mrb[0].mxu0 %v455
  %v596 = vpop.f32.mrb[0].mxu0
  %v597 = vadd.f32 0.0, %v596
  %v598 = vpop.f32.mrb[0].mxu0
  %599 = vmatprep.mubr.f32.mxu0 0.0
  %600 = vmatmul.mubr.f32.gmra.mrb[0].mxu0 %v458
  %v601 = vpop.f32.mrb[0].mxu0
  %v602 = vadd.f32 0.0, %v601
  %v603 = vpop.f32.mrb[0].mxu0
  %604 = vdwg.mxu0
  %v605 = vadd.f32 %v363, %v527
  %v606 = vadd.f32 %v364, %v532
  %v607 = vadd.f32 %v365, %v537
  %v608 = vadd.f32 %v366, %v542
  %v609 = vadd.f32 %v367, %v547
  %v610 = vadd.f32 %v368, %v552
  %v611 = vadd.f32 %v369, %v557
  %v612 = vadd.f32 %v370, %v562
  %v613 = vadd.f32 %v371, %v567
  %v614 = vadd.f32 %v372, %v572
  %v615 = vadd.f32 %v373, %v577
  %v616 = vadd.f32 %v374, %v582
  %v617 = vadd.f32 %v375, %v587
  %v618 = vadd.f32 %v376, %v592
  %v619 = vadd.f32 %v377, %v597
  %v620 = vadd.f32 %v378, %v602
  %621 = vst [vmem:[%s5] sm:$0xff] %v605
  %622 = vst [vmem:[%s5 + $0x8] sm:$0xff] %v606
  %623 = vst [vmem:[%s5 + $0x10] sm:$0xff] %v607
  %624 = vst [vmem:[%s5 + $0x18] sm:$0xff] %v608
  %625 = vst [vmem:[%s5 + $0x20] sm:$0xff] %v609
  %626 = vst [vmem:[%s5 + $0x28] sm:$0xff] %v610
  %627 = vst [vmem:[%s5 + $0x30] sm:$0xff] %v611
  %628 = vst [vmem:[%s5 + $0x38] sm:$0xff] %v612
  %629 = vst [vmem:[%s5 + $0x40] sm:$0xff] %v613
  %630 = vst [vmem:[%s5 + $0x48] sm:$0xff] %v614
  %631 = vst [vmem:[%s5 + $0x50] sm:$0xff] %v615
  %632 = vst [vmem:[%s5 + $0x58] sm:$0xff] %v616
  %633 = vst [vmem:[%s5 + $0x60] sm:$0xff] %v617
  %634 = vst [vmem:[%s5 + $0x68] sm:$0xff] %v618
  %635 = vst [vmem:[%s5 + $0x70] sm:$0xff] %v619
  %636 = vst [vmem:[%s5 + $0x78] sm:$0xff] %v620
  // Predicated region
  $region18: #{oja_fused.1} parent=0 // pred_check
    _
  $region19: #{oja_fused.1} parent=0 // pred_check_branch
    %638 = sbr.rel (0) target = $region21
  $region20: #{oja_fused.1} parent=0 // pred_region
    _
  $region21: #{oja_fused.1} parent=0 // pred_fallthru
    _
  // Predicated region
  $region22: #{oja_fused.1} parent=0 // pred_check
    _
  $region23: #{oja_fused.1} parent=0 // pred_check_branch
    %640 = sbr.rel (0) target = $region25
  $region24: #{oja_fused.1} parent=0 // pred_region
    _
  $region25: #{oja_fused.1} parent=0 // pred_fallthru
    _
  // Predicated region
  $region26: #{oja_fused.1} parent=0 // pred_check
    _
  $region27: #{oja_fused.1} parent=0 // pred_check_branch
    %642 = sbr.rel (0) target = $region29
  $region28: #{oja_fused.1} parent=0 // pred_region
    _
  $region29: #{oja_fused.1} parent=0 // pred_fallthru
    _
  // Predicated region
  $region30: #{oja_fused.1} parent=0 // pred_check
    _
  $region31: #{oja_fused.1} parent=0 // pred_check_branch
    %644 = sbr.rel (0) target = $region33
  $region32: #{oja_fused.1} parent=0 // pred_region
    _
  $region33: #{oja_fused.1} parent=0 // pred_fallthru
    _
  // Predicated region
  $region34: #{oja_fused.1} parent=0 // pred_check
    _
  $region35: #{oja_fused.1} parent=0 // pred_check_branch
    %646 = sbr.rel (0) target = $region37
  $region36: #{oja_fused.1} parent=0 // pred_region
    _
  $region37: #{oja_fused.1} parent=0 // pred_fallthru
    _
  // Predicated region
  $region38: #{oja_fused.1} parent=0 // pred_check
    _
  $region39: #{oja_fused.1} parent=0 // pred_check_branch
    %648 = sbr.rel (0) target = $region41
  $region40: #{oja_fused.1} parent=0 // pred_region
    _
  $region41: #{oja_fused.1} parent=0 // pred_fallthru
    _

</llo_original>
